<compile_context>
chip_gen: v5e
topology: v5e:2x2
jax: 0.10.0
libtpu: 0.0.40
codegen_flags: <defaults>
</compile_context>

<pallas_src>
import math
import functools

import numpy as np
import jax
import jax.numpy as jnp
from jax.experimental import pallas as pl
from jax.experimental.pallas import tpu as pltpu

_LANE = 128
_SUBLANE = 8
_NEG_BIG = -1e30


def _round_up(x, m):
    return ((x + m - 1) // m) * m


def _softmax_rows(x):
    # numerical_stability_softmax(score, dim=1) with exact divide.
    m = jnp.max(x, axis=1, keepdims=True)
    e = jnp.exp(x - m)
    return e / jnp.sum(e, axis=1, keepdims=True)


def _dot_t(a, b):
    # a @ b.T without materializing a transpose (MXU consumes this natively).
    return jax.lax.dot_general(a, b, (((1,), (1,)), ((), ())),
                               preferred_element_type=jnp.float32)


# ----------------------------------------------------------------------------
# Fused per-class kernel body (one grid step == one class):
#   block-diagonal inner self-attention refinement over the whole class slab,
#   then prototype -> refined-feature cross attention, all in VMEM.
# ----------------------------------------------------------------------------
def _graph_transformer_kernel(
        lens_ref,                 # SMEM [num_classes, S_max] int32 (scalar prefetch)
        slab_ref,                 # VMEM [total, Ci_pad]  (class c, total = S_max*n_pad)
        protos_ref,               # VMEM [P_pad, Ci_pad]
        w_inner1_ref,             # VMEM [Co_pad, Ci_pad]
        w_trans_ref,              # VMEM [Ci_pad, Ci_pad]
        w_inter1_ref,             # VMEM [Co_pad, Ci_pad]
        w_inter2_ref,             # VMEM [Co_pad, Ci_pad]
        out_ref,                  # VMEM [P_pad, Ci_pad]
        *, inv_scale, n_pad, s_max):
    c = pl.program_id(0)
    total = s_max * n_pad
    slab = slab_ref[...]                                   # [total, Ci_pad]
    protos = protos_ref[...]                               # [P_pad, Ci_pad]

    # ---- per-row / per-column segment metadata from SMEM lengths -----------
    # Static (small) loop over segments; avoids vector int div/mod entirely.
    row_ids = jax.lax.broadcasted_iota(jnp.int32, (total, 1), 0)
    col_ids = jax.lax.broadcasted_iota(jnp.int32, (1, total), 1)
    row_valid = jnp.zeros((total, 1), jnp.bool_)           # real feature row?
    row_multi = jnp.zeros((total, 1), jnp.bool_)           # segment length > 1?
    col_valid = jnp.zeros((1, total), jnp.bool_)           # real feature column?
    blk_mask = jnp.zeros((total, total), jnp.bool_)        # same-segment & col valid
    for s in range(s_max):
        base = s * n_pad
        l = lens_ref[c, s]
        r_in_pad = jnp.logical_and(row_ids >= base, row_ids < base + n_pad)
        r_valid = jnp.logical_and(r_in_pad, row_ids < base + l)
        c_valid = jnp.logical_and(col_ids >= base, col_ids < base + l)
        row_valid = jnp.logical_or(row_valid, r_valid)
        row_multi = jnp.logical_or(row_multi, jnp.logical_and(r_in_pad, l > 1))
        col_valid = jnp.logical_or(col_valid, c_valid)
        blk_mask = jnp.logical_or(blk_mask, jnp.logical_and(r_in_pad, c_valid))

    # ---- inner self-attention refinement (block-diagonal across segments) --
    e = _dot_t(slab, w_inner1_ref[...])                    # [total, Co_pad]
    score = _dot_t(e, e) * inv_scale                       # [total, total]
    score = jnp.where(blk_mask, score, _NEG_BIG)           # mask cross-segment/pad
    atte = _softmax_rows(score)
    agg = jnp.dot(atte, slab, preferred_element_type=jnp.float32)
    trans = _dot_t(agg, w_trans_ref[...])
    refined = slab + jnp.maximum(trans, 0.0)
    # PyTorch passthrough for n == 1 segments; zero padded rows so the
    # cross-attention (and empty classes) see clean features.
    feats_all = jnp.where(row_valid,
                          jnp.where(row_multi, refined, slab),
                          0.0)                             # [total, Ci_pad]

    # ---- prototype -> unlabeled-feature cross attention ---------------------
    fe = _dot_t(feats_all, w_inter1_ref[...])              # [total, Co_pad]
    pe = _dot_t(protos, w_inter2_ref[...])                 # [P_pad, Co_pad]
    cscore = _dot_t(pe, fe) * inv_scale                    # [P_pad, total]
    cscore = cscore + jnp.where(col_valid, 0.0, _NEG_BIG)  # additive column bias
    catte = _softmax_rows(cscore)
    out_ref[...] = jnp.dot(catte, feats_all, preferred_element_type=jnp.float32)


@functools.partial(jax.jit, static_argnames=("out_channels",))
def _fused_forward(lens, slab, protos_p, w1p, wtp, wi1p, wi2p, *, out_channels):
    num_classes, total, ci_pad = slab.shape
    s_max = lens.shape[1]
    n_pad = total // s_max
    p_pad = protos_p.shape[1]
    co_pad = w1p.shape[0]

    kernel = functools.partial(
        _graph_transformer_kernel,
        inv_scale=1.0 / math.sqrt(out_channels),
        n_pad=n_pad,
        s_max=s_max,
    )

    grid_spec = pltpu.PrefetchScalarGridSpec(
        num_scalar_prefetch=1,
        grid=(num_classes,),
        in_specs=[
            # per-class feature slab & prototypes (leading class dim squeezed)
            pl.BlockSpec((None, total, ci_pad), lambda c, lens: (c, 0, 0)),
            pl.BlockSpec((None, p_pad, ci_pad), lambda c, lens: (c, 0, 0)),
            # four weights: constant index_map -> DMA'd once, VMEM-resident
            pl.BlockSpec((co_pad, ci_pad), lambda c, lens: (0, 0)),
            pl.BlockSpec((ci_pad, ci_pad), lambda c, lens: (0, 0)),
            pl.BlockSpec((co_pad, ci_pad), lambda c, lens: (0, 0)),
            pl.BlockSpec((co_pad, ci_pad), lambda c, lens: (0, 0)),
        ],
        out_specs=pl.BlockSpec((None, p_pad, ci_pad), lambda c, lens: (c, 0, 0)),
    )

    return pl.pallas_call(
        kernel,
        grid_spec=grid_spec,
        out_shape=jax.ShapeDtypeStruct((num_classes, p_pad, ci_pad), jnp.float32),
        # classes are independent -> parallel (megacore sharding on v7x)
        compiler_params=pltpu.CompilerParams(dimension_semantics=("parallel",)),
    )(lens, slab, protos_p, w1p, wtp, wi1p, wi2p)


# ----------------------------------------------------------------------------
# Module wrapper (host glue: ragged -> padded numpy slabs, one kernel launch)
# ----------------------------------------------------------------------------
class GraphTransformer:
    def __init__(self, in_channels, out_channels, key, scale=0.2):
        self.in_channels = in_channels
        self.out_channels = out_channels
        self.ci_pad = _round_up(in_channels, _LANE)
        self.co_pad = _round_up(out_channels, _LANE)

        k1, k2, k3, k4 = jax.random.split(key, 4)

        def linear_weight(k, out_f, in_f):
            # deterministic stand-in for torch's default kaiming-uniform init
            bound = math.sqrt(3.0) * math.sqrt(1.0 / in_f)
            return jax.random.uniform(k, (out_f, in_f), jnp.float32, -bound, bound)

        self.inner_w1 = linear_weight(k1, out_channels, in_channels)     # [Cout, Cin]
        self.inner_trans = linear_weight(k2, in_channels, in_channels)   # [Cin, Cin]
        self.inter_w1 = linear_weight(k3, out_channels, in_channels)     # [Cout, Cin]
        self.inter_w2 = linear_weight(k4, out_channels, in_channels)     # [Cout, Cin]

        def pad_w(w, r_pad, c_pad):
            return jnp.zeros((r_pad, c_pad), jnp.float32).at[
                :w.shape[0], :w.shape[1]].set(w)

        # Zero-padded, lane-dense weight copies for the kernel (padding is inert).
        self._inner_w1_p = pad_w(self.inner_w1, self.co_pad, self.ci_pad)
        self._inner_trans_p = pad_w(self.inner_trans, self.ci_pad, self.ci_pad)
        self._inter_w1_p = pad_w(self.inter_w1, self.co_pad, self.ci_pad)
        self._inter_w2_p = pad_w(self.inter_w2, self.co_pad, self.ci_pad)

    def __call__(self, topk_feats, prototypes):
        num_classes = len(topk_feats)
        usable = [[np.asarray(f, np.float32) for f in feats if f is not None]
                  for feats in topk_feats]
        protos_np = [np.asarray(p, np.float32) for p in prototypes]

        s_max = max([len(u) for u in usable] + [1])
        max_n = max([int(f.shape[0]) for u in usable for f in u] + [1])
        n_pad = _round_up(max_n, _SUBLANE)
        total = s_max * n_pad
        p_pad = _round_up(max(int(p.shape[0]) for p in protos_np), _SUBLANE)

        # Host-side padding into preallocated numpy slabs (3 device transfers).
        slab = np.zeros((num_classes, total, self.ci_pad), np.float32)
        lens = np.zeros((num_classes, s_max), np.int32)
        protos_p = np.zeros((num_classes, p_pad, self.ci_pad), np.float32)
        for ci in range(num_classes):
            for si, f in enumerate(usable[ci]):
                n = int(f.shape[0])
                lens[ci, si] = n
                slab[ci, si * n_pad: si * n_pad + n, :f.shape[1]] = f
            pr = protos_np[ci]
            protos_p[ci, :pr.shape[0], :pr.shape[1]] = pr

        out = _fused_forward(
            jnp.asarray(lens), jnp.asarray(slab), jnp.asarray(protos_p),
            self._inner_w1_p, self._inner_trans_p,
            self._inter_w1_p, self._inter_w2_p,
            out_channels=self.out_channels)

        return [out[ci, :protos_np[ci].shape[0], :self.in_channels]
                for ci in range(num_classes)]


# ----------------------------------------------------------------------------
# Pure-JAX reference (mirrors the PyTorch forward exactly) for a sanity check
# ----------------------------------------------------------------------------
def _reference_forward(model, topk_feats, prototypes):
    def softmax_rows(x):
        m = jnp.max(x, axis=1, keepdims=True)
        e = jnp.exp(x - m)
        return e / jnp.sum(e, axis=1, keepdims=True)

    scale = math.sqrt(model.out_channels)
    outs = []
    for feats, protos in zip(topk_feats, prototypes):
        feats_all = []
        for feat in feats:
            if feat is None:
                continue
            if feat.shape[0] == 1:
                feats_all.append(feat)
            else:
                e = feat @ model.inner_w1.T
                atte = softmax_rows((e @ e.T) / scale)
                feat = feat + jax.nn.relu((atte @ feat) @ model.inner_trans.T)
                feats_all.append(feat)
        if feats_all:
            fa = jnp.concatenate(feats_all, axis=0)
            fe = fa @ model.inter_w1.T
            pe = protos @ model.inter_w2.T
            atte = softmax_rows((pe @ fe.T) / scale)
            outs.append(atte @ fa)
        else:
            outs.append(jnp.zeros_like(protos))
    return outs


# ----------------------------------------------------------------------------
# Demo
# ----------------------------------------------------------------------------
if __name__ == "__main__":
    in_channels = 32
    out_channels = 16
    num_protos = 5

    key = jax.random.PRNGKey(0)
    key_params, key_data = jax.random.split(key)
    model = GraphTransformer(in_channels, out_channels, key_params)

    dkeys = jax.random.split(key_data, 8)

    # num_class = 3; per class a ragged list of [n_i, in_channels] feats (or None)
    topk_feats = [
        [  # class 0: mixed sizes, one None, one single-row (passthrough) feat
            jax.random.normal(dkeys[0], (6, in_channels), jnp.float32),
            jax.random.normal(dkeys[1], (1, in_channels), jnp.float32),
            None,
            jax.random.normal(dkeys[2], (8, in_channels), jnp.float32),
        ],
        [  # class 1
            jax.random.normal(dkeys[3], (4, in_channels), jnp.float32),
            jax.random.normal(dkeys[4], (4, in_channels), jnp.float32),
        ],
        [  # class 2: nothing usable -> zero prototypes branch
            None,
        ],
    ]
    prototypes = [
        jax.random.normal(dkeys[5], (num_protos, in_channels), jnp.float32),
        jax.random.normal(dkeys[6], (num_protos, in_channels), jnp.float32),
        jax.random.normal(dkeys[7], (num_protos, in_channels), jnp.float32),
    ]

    un_prototypes = model(topk_feats, prototypes)
    refs = _reference_forward(model, topk_feats, prototypes)

    for up, ref in zip(un_prototypes, refs):
        jax.block_until_ready(up)
        assert up.shape == (num_protos, in_channels)
        # tolerance covers MXU default-precision f32 matmuls vs. XLA reference
        assert bool(jnp.allclose(up, ref, rtol=1e-2, atol=1e-2)), (
            f"max abs err {float(jnp.max(jnp.abs(up - ref)))}")

    print("KERNEL_OK")
</pallas_src>

<mosaic_0001>
module attributes {stable_mosaic.version = 11 : i64} {
  func.func @_graph_transformer_kernel(%arg0: i32, %arg1: memref<3x3xi32, #tpu.memory_space<smem>>, %arg2: memref<1x24x128xf32, #tpu.memory_space<vmem>>, %arg3: memref<1x8x128xf32, #tpu.memory_space<vmem>>, %arg4: memref<128x128xf32, #tpu.memory_space<vmem>>, %arg5: memref<128x128xf32, #tpu.memory_space<vmem>>, %arg6: memref<128x128xf32, #tpu.memory_space<vmem>>, %arg7: memref<128x128xf32, #tpu.memory_space<vmem>>, %arg8: memref<1x8x128xf32, #tpu.memory_space<vmem>>) attributes {dimension_semantics = [#tpu.dimension_semantics<parallel>], iteration_bounds = array<i64: 3>, scalar_prefetch = 1 : i64, scratch_operands = 0 : i64, tpu.core_type = #tpu.core_type<tc>, window_params = [{transform_indices = @transform_0, window_bounds = array<i64: 1, 24, 128>}, {transform_indices = @transform_1, window_bounds = array<i64: 1, 8, 128>}, {pipeline_mode = #tpu.pipeline_mode<synchronous>, transform_indices = @transform_2, window_bounds = array<i64: 128, 128>}, {pipeline_mode = #tpu.pipeline_mode<synchronous>, transform_indices = @transform_3, window_bounds = array<i64: 128, 128>}, {pipeline_mode = #tpu.pipeline_mode<synchronous>, transform_indices = @transform_4, window_bounds = array<i64: 128, 128>}, {pipeline_mode = #tpu.pipeline_mode<synchronous>, transform_indices = @transform_5, window_bounds = array<i64: 128, 128>}, {transform_indices = @transform_6, window_bounds = array<i64: 1, 8, 128>}]} {
    %c0 = arith.constant 0 : index
    %c0_0 = arith.constant 0 : index
    %c0_1 = arith.constant 0 : index
    %0 = vector.load %arg2[%c0, %c0_0, %c0_1] : memref<1x24x128xf32, #tpu.memory_space<vmem>>, vector<1x24x128xf32>
    %1 = vector.shape_cast %0 : vector<1x24x128xf32> to vector<24x128xf32>
    %c0_2 = arith.constant 0 : index
    %c0_3 = arith.constant 0 : index
    %c0_4 = arith.constant 0 : index
    %2 = vector.load %arg3[%c0_2, %c0_3, %c0_4] : memref<1x8x128xf32, #tpu.memory_space<vmem>>, vector<1x8x128xf32>
    %3 = vector.shape_cast %2 : vector<1x8x128xf32> to vector<8x128xf32>
    %4 = tpu.iota {dimensions = array<i32: 0>} : vector<24x1xi32>
    %5 = tpu.iota {dimensions = array<i32: 1>} : vector<1x24xi32>
    %false = arith.constant false
    %6 = vector.broadcast %false : i1 to vector<24x1xi1>
    %false_5 = arith.constant false
    %7 = vector.broadcast %false_5 : i1 to vector<24x1xi1>
    %false_6 = arith.constant false
    %8 = vector.broadcast %false_6 : i1 to vector<1x24xi1>
    %false_7 = arith.constant false
    %9 = vector.broadcast %false_7 : i1 to vector<24x24xi1>
    %10 = arith.index_cast %arg0 : i32 to index
    %c0_8 = arith.constant 0 : index
    %11 = memref.load %arg1[%10, %c0_8] : memref<3x3xi32, #tpu.memory_space<smem>>
    %c0_i32 = arith.constant 0 : i32
    %12 = vector.broadcast %c0_i32 : i32 to vector<24x1xi32>
    %13 = arith.cmpi sge, %4, %12 : vector<24x1xi32>
    %c8_i32 = arith.constant 8 : i32
    %14 = vector.broadcast %c8_i32 : i32 to vector<24x1xi32>
    %15 = arith.cmpi slt, %4, %14 : vector<24x1xi32>
    %16 = arith.andi %13, %15 : vector<24x1xi1>
    %c0_i32_9 = arith.constant 0 : i32
    %17 = arith.addi %c0_i32_9, %11 : i32
    %18 = vector.broadcast %17 : i32 to vector<24x1xi32>
    %19 = arith.cmpi slt, %4, %18 : vector<24x1xi32>
    %20 = arith.andi %16, %19 : vector<24x1xi1>
    %c0_i32_10 = arith.constant 0 : i32
    %21 = vector.broadcast %c0_i32_10 : i32 to vector<1x24xi32>
    %22 = arith.cmpi sge, %5, %21 : vector<1x24xi32>
    %c0_i32_11 = arith.constant 0 : i32
    %23 = arith.addi %c0_i32_11, %11 : i32
    %24 = vector.broadcast %23 : i32 to vector<1x24xi32>
    %25 = arith.cmpi slt, %5, %24 : vector<1x24xi32>
    %26 = arith.andi %22, %25 : vector<1x24xi1>
    %27 = arith.ori %6, %20 : vector<24x1xi1>
    %c1_i32 = arith.constant 1 : i32
    %28 = arith.cmpi sgt, %11, %c1_i32 : i32
    %29 = vector.broadcast %28 : i1 to vector<24x1xi1>
    %30 = arith.andi %16, %29 : vector<24x1xi1>
    %31 = arith.ori %7, %30 : vector<24x1xi1>
    %32 = arith.ori %8, %26 : vector<1x24xi1>
    %33 = vector.broadcast %16 : vector<24x1xi1> to vector<24x24xi1>
    %34 = vector.broadcast %26 : vector<1x24xi1> to vector<24x24xi1>
    %35 = arith.andi %33, %34 : vector<24x24xi1>
    %36 = arith.ori %9, %35 : vector<24x24xi1>
    %37 = arith.index_cast %arg0 : i32 to index
    %c1 = arith.constant 1 : index
    %38 = memref.load %arg1[%37, %c1] : memref<3x3xi32, #tpu.memory_space<smem>>
    %c8_i32_12 = arith.constant 8 : i32
    %39 = vector.broadcast %c8_i32_12 : i32 to vector<24x1xi32>
    %40 = arith.cmpi sge, %4, %39 : vector<24x1xi32>
    %c16_i32 = arith.constant 16 : i32
    %41 = vector.broadcast %c16_i32 : i32 to vector<24x1xi32>
    %42 = arith.cmpi slt, %4, %41 : vector<24x1xi32>
    %43 = arith.andi %40, %42 : vector<24x1xi1>
    %c8_i32_13 = arith.constant 8 : i32
    %44 = arith.addi %c8_i32_13, %38 : i32
    %45 = vector.broadcast %44 : i32 to vector<24x1xi32>
    %46 = arith.cmpi slt, %4, %45 : vector<24x1xi32>
    %47 = arith.andi %43, %46 : vector<24x1xi1>
    %c8_i32_14 = arith.constant 8 : i32
    %48 = vector.broadcast %c8_i32_14 : i32 to vector<1x24xi32>
    %49 = arith.cmpi sge, %5, %48 : vector<1x24xi32>
    %c8_i32_15 = arith.constant 8 : i32
    %50 = arith.addi %c8_i32_15, %38 : i32
    %51 = vector.broadcast %50 : i32 to vector<1x24xi32>
    %52 = arith.cmpi slt, %5, %51 : vector<1x24xi32>
    %53 = arith.andi %49, %52 : vector<1x24xi1>
    %54 = arith.ori %27, %47 : vector<24x1xi1>
    %c1_i32_16 = arith.constant 1 : i32
    %55 = arith.cmpi sgt, %38, %c1_i32_16 : i32
    %56 = vector.broadcast %55 : i1 to vector<24x1xi1>
    %57 = arith.andi %43, %56 : vector<24x1xi1>
    %58 = arith.ori %31, %57 : vector<24x1xi1>
    %59 = arith.ori %32, %53 : vector<1x24xi1>
    %60 = vector.broadcast %43 : vector<24x1xi1> to vector<24x24xi1>
    %61 = vector.broadcast %53 : vector<1x24xi1> to vector<24x24xi1>
    %62 = arith.andi %60, %61 : vector<24x24xi1>
    %63 = arith.ori %36, %62 : vector<24x24xi1>
    %64 = arith.index_cast %arg0 : i32 to index
    %c2 = arith.constant 2 : index
    %65 = memref.load %arg1[%64, %c2] : memref<3x3xi32, #tpu.memory_space<smem>>
    %c16_i32_17 = arith.constant 16 : i32
    %66 = vector.broadcast %c16_i32_17 : i32 to vector<24x1xi32>
    %67 = arith.cmpi sge, %4, %66 : vector<24x1xi32>
    %c24_i32 = arith.constant 24 : i32
    %68 = vector.broadcast %c24_i32 : i32 to vector<24x1xi32>
    %69 = arith.cmpi slt, %4, %68 : vector<24x1xi32>
    %70 = arith.andi %67, %69 : vector<24x1xi1>
    %c16_i32_18 = arith.constant 16 : i32
    %71 = arith.addi %c16_i32_18, %65 : i32
    %72 = vector.broadcast %71 : i32 to vector<24x1xi32>
    %73 = arith.cmpi slt, %4, %72 : vector<24x1xi32>
    %74 = arith.andi %70, %73 : vector<24x1xi1>
    %c16_i32_19 = arith.constant 16 : i32
    %75 = vector.broadcast %c16_i32_19 : i32 to vector<1x24xi32>
    %76 = arith.cmpi sge, %5, %75 : vector<1x24xi32>
    %c16_i32_20 = arith.constant 16 : i32
    %77 = arith.addi %c16_i32_20, %65 : i32
    %78 = vector.broadcast %77 : i32 to vector<1x24xi32>
    %79 = arith.cmpi slt, %5, %78 : vector<1x24xi32>
    %80 = arith.andi %76, %79 : vector<1x24xi1>
    %81 = arith.ori %54, %74 : vector<24x1xi1>
    %c1_i32_21 = arith.constant 1 : i32
    %82 = arith.cmpi sgt, %65, %c1_i32_21 : i32
    %83 = vector.broadcast %82 : i1 to vector<24x1xi1>
    %84 = arith.andi %70, %83 : vector<24x1xi1>
    %85 = arith.ori %58, %84 : vector<24x1xi1>
    %86 = arith.ori %59, %80 : vector<1x24xi1>
    %87 = vector.broadcast %70 : vector<24x1xi1> to vector<24x24xi1>
    %88 = vector.broadcast %80 : vector<1x24xi1> to vector<24x24xi1>
    %89 = arith.andi %87, %88 : vector<24x24xi1>
    %90 = arith.ori %63, %89 : vector<24x24xi1>
    %c0_22 = arith.constant 0 : index
    %c0_23 = arith.constant 0 : index
    %91 = vector.load %arg4[%c0_22, %c0_23] : memref<128x128xf32, #tpu.memory_space<vmem>>, vector<128x128xf32>
    %cst = arith.constant dense<0.000000e+00> : vector<24x128xf32>
    %92 = tpu.matmul %1, %91, %cst {dimension_numbers = #tpu.dot_dimension_numbers<[1], [1], [0], [0], [0, 0, 1, 0], [], []>} : vector<24x128xf32>, vector<128x128xf32>, vector<24x128xf32> -> vector<24x128xf32>
    %cst_24 = arith.constant dense<0.000000e+00> : vector<24x24xf32>
    %93 = tpu.matmul %92, %92, %cst_24 {dimension_numbers = #tpu.dot_dimension_numbers<[1], [1], [0], [0], [0, 0, 1, 0], [], []>} : vector<24x128xf32>, vector<24x128xf32>, vector<24x24xf32> -> vector<24x24xf32>
    %cst_25 = arith.constant 2.500000e-01 : f32
    %94 = vector.broadcast %cst_25 : f32 to vector<24x24xf32>
    %95 = arith.mulf %93, %94 : vector<24x24xf32>
    %cst_26 = arith.constant -1.000000e+30 : f32
    %96 = vector.broadcast %cst_26 : f32 to vector<24x24xf32>
    %97 = arith.select %90, %95, %96 : vector<24x24xi1>, vector<24x24xf32>
    %cst_27 = arith.constant dense<0xFF800000> : vector<24xf32>
    %98 = vector.multi_reduction <maximumf>, %97, %cst_27 [1] : vector<24x24xf32> to vector<24xf32>
    %99 = vector.shape_cast %98 : vector<24xf32> to vector<24x1xf32>
    %100 = vector.broadcast %99 : vector<24x1xf32> to vector<24x24xf32>
    %101 = arith.subf %97, %100 : vector<24x24xf32>
    %102 = math.exp %101 : vector<24x24xf32>
    %cst_28 = arith.constant dense<0.000000e+00> : vector<24xf32>
    %103 = vector.multi_reduction <add>, %102, %cst_28 [1] : vector<24x24xf32> to vector<24xf32>
    %104 = vector.shape_cast %103 : vector<24xf32> to vector<24x1xf32>
    %105 = vector.broadcast %104 : vector<24x1xf32> to vector<24x24xf32>
    %106 = arith.divf %102, %105 : vector<24x24xf32>
    %cst_29 = arith.constant dense<0.000000e+00> : vector<24x128xf32>
    %107 = tpu.matmul %106, %1, %cst_29 {dimension_numbers = #tpu.dot_dimension_numbers<[1], [0], [0], [1], [0, 0, 1, 1], [], []>} : vector<24x24xf32>, vector<24x128xf32>, vector<24x128xf32> -> vector<24x128xf32>
    %c0_30 = arith.constant 0 : index
    %c0_31 = arith.constant 0 : index
    %108 = vector.load %arg5[%c0_30, %c0_31] : memref<128x128xf32, #tpu.memory_space<vmem>>, vector<128x128xf32>
    %cst_32 = arith.constant dense<0.000000e+00> : vector<24x128xf32>
    %109 = tpu.matmul %107, %108, %cst_32 {dimension_numbers = #tpu.dot_dimension_numbers<[1], [1], [0], [0], [0, 0, 1, 0], [], []>} : vector<24x128xf32>, vector<128x128xf32>, vector<24x128xf32> -> vector<24x128xf32>
    %cst_33 = arith.constant 0.000000e+00 : f32
    %110 = vector.broadcast %cst_33 : f32 to vector<24x128xf32>
    %111 = arith.maximumf %109, %110 : vector<24x128xf32>
    %112 = arith.addf %1, %111 : vector<24x128xf32>
    %113 = vector.shape_cast %85 : vector<24x1xi1> to vector<24x1xi1>
    %114 = vector.broadcast %113 : vector<24x1xi1> to vector<24x128xi1>
    %115 = arith.select %114, %112, %1 : vector<24x128xi1>, vector<24x128xf32>
    %cst_34 = arith.constant 0.000000e+00 : f32
    %116 = vector.shape_cast %81 : vector<24x1xi1> to vector<24x1xi1>
    %117 = vector.broadcast %116 : vector<24x1xi1> to vector<24x128xi1>
    %118 = vector.broadcast %cst_34 : f32 to vector<24x128xf32>
    %119 = arith.select %117, %115, %118 : vector<24x128xi1>, vector<24x128xf32>
    %c0_35 = arith.constant 0 : index
    %c0_36 = arith.constant 0 : index
    %120 = vector.load %arg6[%c0_35, %c0_36] : memref<128x128xf32, #tpu.memory_space<vmem>>, vector<128x128xf32>
    %cst_37 = arith.constant dense<0.000000e+00> : vector<24x128xf32>
    %121 = tpu.matmul %119, %120, %cst_37 {dimension_numbers = #tpu.dot_dimension_numbers<[1], [1], [0], [0], [0, 0, 1, 0], [], []>} : vector<24x128xf32>, vector<128x128xf32>, vector<24x128xf32> -> vector<24x128xf32>
    %c0_38 = arith.constant 0 : index
    %c0_39 = arith.constant 0 : index
    %122 = vector.load %arg7[%c0_38, %c0_39] : memref<128x128xf32, #tpu.memory_space<vmem>>, vector<128x128xf32>
    %cst_40 = arith.constant dense<0.000000e+00> : vector<8x128xf32>
    %123 = tpu.matmul %3, %122, %cst_40 {dimension_numbers = #tpu.dot_dimension_numbers<[1], [1], [0], [0], [0, 0, 1, 0], [], []>} : vector<8x128xf32>, vector<128x128xf32>, vector<8x128xf32> -> vector<8x128xf32>
    %cst_41 = arith.constant dense<0.000000e+00> : vector<8x24xf32>
    %124 = tpu.matmul %123, %121, %cst_41 {dimension_numbers = #tpu.dot_dimension_numbers<[1], [1], [0], [0], [0, 0, 1, 0], [], []>} : vector<8x128xf32>, vector<24x128xf32>, vector<8x24xf32> -> vector<8x24xf32>
    %cst_42 = arith.constant 2.500000e-01 : f32
    %125 = vector.broadcast %cst_42 : f32 to vector<8x24xf32>
    %126 = arith.mulf %124, %125 : vector<8x24xf32>
    %cst_43 = arith.constant 0.000000e+00 : f32
    %cst_44 = arith.constant -1.000000e+30 : f32
    %127 = vector.broadcast %cst_43 : f32 to vector<1x24xf32>
    %128 = vector.broadcast %cst_44 : f32 to vector<1x24xf32>
    %129 = arith.select %86, %127, %128 : vector<1x24xi1>, vector<1x24xf32>
    %130 = vector.broadcast %129 : vector<1x24xf32> to vector<8x24xf32>
    %131 = arith.addf %126, %130 : vector<8x24xf32>
    %cst_45 = arith.constant dense<0xFF800000> : vector<8xf32>
    %132 = vector.multi_reduction <maximumf>, %131, %cst_45 [1] : vector<8x24xf32> to vector<8xf32>
    %133 = vector.shape_cast %132 : vector<8xf32> to vector<8x1xf32>
    %134 = vector.broadcast %133 : vector<8x1xf32> to vector<8x24xf32>
    %135 = arith.subf %131, %134 : vector<8x24xf32>
    %136 = math.exp %135 : vector<8x24xf32>
    %cst_46 = arith.constant dense<0.000000e+00> : vector<8xf32>
    %137 = vector.multi_reduction <add>, %136, %cst_46 [1] : vector<8x24xf32> to vector<8xf32>
    %138 = vector.shape_cast %137 : vector<8xf32> to vector<8x1xf32>
    %139 = vector.broadcast %138 : vector<8x1xf32> to vector<8x24xf32>
    %140 = arith.divf %136, %139 : vector<8x24xf32>
    %cst_47 = arith.constant dense<0.000000e+00> : vector<8x128xf32>
    %141 = tpu.matmul %140, %119, %cst_47 {dimension_numbers = #tpu.dot_dimension_numbers<[1], [0], [0], [1], [0, 0, 1, 1], [], []>} : vector<8x24xf32>, vector<24x128xf32>, vector<8x128xf32> -> vector<8x128xf32>
    %c0_48 = arith.constant 0 : index
    %c0_49 = arith.constant 0 : index
    %c0_50 = arith.constant 0 : index
    %142 = vector.load %arg8[%c0_48, %c0_49, %c0_50] : memref<1x8x128xf32, #tpu.memory_space<vmem>>, vector<1x8x128xf32>
    %143 = vector.shape_cast %142 : vector<1x8x128xf32> to vector<8x128xf32>
    %144 = vector.shape_cast %141 : vector<8x128xf32> to vector<1x8x128xf32>
    tpu.vector_store %arg8[%c0_48, %c0_49, %c0_50], %144 {strides = array<i32>} : memref<1x8x128xf32, #tpu.memory_space<vmem>>, vector<1x8x128xf32>,
    return
  }
  func.func @transform_0(%arg0: i32, %arg1: memref<3x3xi32, #tpu.memory_space<smem>>) -> (i32, i32, i32) {
    %c0_i32 = arith.constant 0 : i32
    %c0_i32_0 = arith.constant 0 : i32
    %c0_i32_1 = arith.constant 0 : i32
    return %arg0, %c0_i32, %c0_i32_0 : i32, i32, i32
  }
  func.func @transform_1(%arg0: i32, %arg1: memref<3x3xi32, #tpu.memory_space<smem>>) -> (i32, i32, i32) {
    %c0_i32 = arith.constant 0 : i32
    %c0_i32_0 = arith.constant 0 : i32
    %c0_i32_1 = arith.constant 0 : i32
    return %arg0, %c0_i32, %c0_i32_0 : i32, i32, i32
  }
  func.func @transform_2(%arg0: i32, %arg1: memref<3x3xi32, #tpu.memory_space<smem>>) -> (i32, i32) {
    %c0_i32 = arith.constant 0 : i32
    %c0_i32_0 = arith.constant 0 : i32
    %c0_i32_1 = arith.constant 0 : i32
    return %c0_i32, %c0_i32_0 : i32, i32
  }
  func.func @transform_3(%arg0: i32, %arg1: memref<3x3xi32, #tpu.memory_space<smem>>) -> (i32, i32) {
    %c0_i32 = arith.constant 0 : i32
    %c0_i32_0 = arith.constant 0 : i32
    %c0_i32_1 = arith.constant 0 : i32
    return %c0_i32, %c0_i32_0 : i32, i32
  }
  func.func @transform_4(%arg0: i32, %arg1: memref<3x3xi32, #tpu.memory_space<smem>>) -> (i32, i32) {
    %c0_i32 = arith.constant 0 : i32
    %c0_i32_0 = arith.constant 0 : i32
    %c0_i32_1 = arith.constant 0 : i32
    return %c0_i32, %c0_i32_0 : i32, i32
  }
  func.func @transform_5(%arg0: i32, %arg1: memref<3x3xi32, #tpu.memory_space<smem>>) -> (i32, i32) {
    %c0_i32 = arith.constant 0 : i32
    %c0_i32_0 = arith.constant 0 : i32
    %c0_i32_1 = arith.constant 0 : i32
    return %c0_i32, %c0_i32_0 : i32, i32
  }
  func.func @transform_6(%arg0: i32, %arg1: memref<3x3xi32, #tpu.memory_space<smem>>) -> (i32, i32, i32) {
    %c0_i32 = arith.constant 0 : i32
    %c0_i32_0 = arith.constant 0 : i32
    %c0_i32_1 = arith.constant 0 : i32
    return %arg0, %c0_i32, %c0_i32_0 : i32, i32, i32
  }
}

</mosaic_0001>

<llo_original>
// kernel: _fused_forward.1
$region0: #{_fused_forward.1}
  #allocation0 [shape = 'u32[]', space=smem, size = 0x4, offset = 0x4, fixed_abs, tag = 'smem constant byte address 0x4 - core index']
  #allocation1 [shape = 'u32[72,128]{1,0:T(1,128)}', space=vmem, size = 0x9000, scoped, tag = 'internal scratch']
  #allocation2 [shape = 's32[1]{0}', space=sflag, size = 0x4, scoped, tag = 'scoped memory for _fused_forward.1']
  #allocation3 [shape = 'u8[2048]{0}', space=smem, size = 0x800, scoped, tag = 'prefetched SMEM operand 0']
  %s0 = inlined_call_operand.hbm [shape: s32[3,3], index: 0, kind: input, shape index: {}]
  %s1 = inlined_call_operand.hbm [shape: f32[3,24,128], index: 1, kind: input, shape index: {}]
  %s2 = inlined_call_operand.hbm [shape: f32[3,8,128], index: 2, kind: input, shape index: {}]
  %s3 = inlined_call_operand.hbm [shape: f32[128,128], index: 3, kind: input, shape index: {}]
  %s4 = inlined_call_operand.hbm [shape: f32[128,128], index: 4, kind: input, shape index: {}]
  %s5 = inlined_call_operand.hbm [shape: f32[128,128], index: 5, kind: input, shape index: {}]
  %s6 = inlined_call_operand.hbm [shape: f32[128,128], index: 6, kind: input, shape index: {}]
  %s7 = inlined_call_operand.hbm [shape: f32[3,8,128], index: 7, kind: output, shape index: {}]
  %s8 = sld [smem:[#allocation0]]
  $region81: #{_fused_forward.1} parent=0
    _
  %s10 = ssub.s32 1, %s8
  %s11 = scalar_select 0, %s10, %s8
  %s13 = sshll.u32 %s0, 4
  %s14 = int_to_ptr.hbm [resolvable:$true] %s13
  %16 = dma.hbm_to_smem %s14, 64, [#allocation3], [#allocation2]
  %18 = dma.done [#allocation2], 64
  %19 = sfence
  $region1: #{_fused_forward.1} parent=0
    #allocation4 [shape = 'u8[24576]{0}', space=vmem, size = 0x6000, scoped, tag = 'input window, operand 1']
    #allocation5 [shape = 's32[2]{0}', space=sflag, size = 0x8, scoped, tag = 'scoped memory for _fused_forward.1']
    #allocation6 [shape = 's32[2]{0}', space=sflag, size = 0x8, scoped, tag = 'scoped memory for _fused_forward.1']
    #allocation7 [shape = 'u8[8192]{0}', space=vmem, size = 0x2000, scoped, tag = 'input window, operand 2']
    #allocation8 [shape = 's32[2]{0}', space=sflag, size = 0x8, scoped, tag = 'scoped memory for _fused_forward.1']
    #allocation9 [shape = 'u8[65536]{0}', space=vmem, size = 0x10000, scoped, tag = 'input window, operand 3, single buffered']
    #allocation10 [shape = 'u8[65536]{0}', space=vmem, size = 0x10000, scoped, tag = 'input window, operand 4, single buffered']
    #allocation11 [shape = 's32[1]{0}', space=sflag, size = 0x4, scoped, tag = 'scoped memory for _fused_forward.1']
    #allocation12 [shape = 'u8[65536]{0}', space=vmem, size = 0x10000, scoped, tag = 'input window, operand 5, single buffered']
    #allocation13 [shape = 'u8[65536]{0}', space=vmem, size = 0x10000, scoped, tag = 'input window, operand 6, single buffered']
    #allocation14 [shape = 's32[1]{0}', space=sflag, size = 0x4, scoped, tag = 'scoped memory for _fused_forward.1']
    #allocation15 [shape = 'u8[8192]{0}', space=vmem, size = 0x2000, scoped, tag = 'output window, operand 0']
    %20 = vsyncpa [#allocation5], 0
    %s21 = scalar_lea.sflag [#allocation5], 1
    %22 = vsyncpa %s21, 0
    %23 = vsyncpa [#allocation8], 0
    %s24 = scalar_lea.sflag [#allocation8], 1
    %25 = vsyncpa %s24, 0
    %26 = vsyncpa [#allocation11], 0
    %27 = vsyncpa [#allocation14], 0
    %28 = vsyncpa [#allocation6], 0
    %s29 = scalar_lea.sflag [#allocation6], 1
    %30 = vsyncpa %s29, 0
    loop: start=0, step=1, limit=5
    $region2: #{_fused_forward.1} parent=1 // loop_pre_header
      _
    $region3: #{_fused_forward.1} parent=1 // loop_header
      %s32 = sphi 0, %s36
      %p33 = scmp.ge.s32.totalorder %s32, 5
      %s42 = sphi 0, %s44
      %s45 = sphi 0, %s42
      %s46 = sphi 0, %s45
      %s62 = sphi 0, %s46
      %s68 = sphi 0, %s70
      %s71 = sphi 0, %s68
      %s72 = sphi 0, %s71
      %s88 = sphi 0, %s72
      %s92 = sphi 0, %s92
      %s94 = sphi 0, %s92
      %s95 = sphi 0, %s94
      %s109 = sphi 0, %s95
      %s113 = sphi 0, %s113
      %s115 = sphi 0, %s113
      %s116 = sphi 0, %s115
      %s130 = sphi 0, %s116
      %s134 = sphi 0, %s134
      %s136 = sphi 0, %s134
      %s137 = sphi 0, %s136
      %s151 = sphi 0, %s137
      %s155 = sphi 0, %s155
      %s157 = sphi 0, %s155
      %s158 = sphi 0, %s157
      %s172 = sphi 0, %s158
      %s178 = sphi 0, %s180
      %s181 = sphi 0, %s178
      %s182 = sphi 0, %s181
      %s198 = sphi 0, %s182
    $region4: #{_fused_forward.1} parent=1 // loop_header_branch
      %35 = sbr.rel (%p33) target = $region8
    $region5: #{_fused_forward.1} parent=1 // loop_body
      %s37 = ssub.s32 %s32, 1
      %s38 = ssub.s32 %s32, 2
      %s39 = sadd.s32 %s32, 1
      %s40 = ssub.s32 %s32, %s39
      %p41 = scmp.eq.s32.totalorder %s40, 0
      %s43 = sadd.s32 %s42, 1
      %s44 = scalar_select %p41, %s42, %s43
      %p47 = pneg %p41
      %p48 = scmp.eq.s32.totalorder %s32, 2
      %p49 = por %p47, %p48
      %p50 = scmp.ne.s32.totalorder %s42, %s45
      %p51 = scmp.eq.s32.totalorder %s32, 0
      %p52 = por %p50, %p51
      %p53 = scmp.ne.s32.totalorder %s42, %s45
      %p54 = scmp.eq.s32.totalorder %s37, 2
      %p55 = por %p53, %p54
      %p56 = scmp.ne.s32.totalorder %s45, %s46
      %p57 = scmp.eq.s32.totalorder %s37, 0
      %p58 = por %p56, %p57
      %p59 = scmp.ne.s32.totalorder %s45, %s46
      %p60 = scmp.eq.s32.totalorder %s38, 2
      %p61 = por %p59, %p60
      %p63 = scmp.ne.s32.totalorder %s46, %s62
      %p64 = scmp.eq.s32.totalorder %s38, 0
      %p65 = por %p63, %p64
      %s66 = ssub.s32 %s32, %s39
      %p67 = scmp.eq.s32.totalorder %s66, 0
      %s69 = sadd.s32 %s68, 1
      %s70 = scalar_select %p67, %s68, %s69
      %p73 = pneg %p67
      %p74 = scmp.eq.s32.totalorder %s32, 2
      %p75 = por %p73, %p74
      %p76 = scmp.ne.s32.totalorder %s68, %s71
      %p77 = scmp.eq.s32.totalorder %s32, 0
      %p78 = por %p76, %p77
      %p79 = scmp.ne.s32.totalorder %s68, %s71
      %p80 = scmp.eq.s32.totalorder %s37, 2
      %p81 = por %p79, %p80
      %p82 = scmp.ne.s32.totalorder %s71, %s72
      %p83 = scmp.eq.s32.totalorder %s37, 0
      %p84 = por %p82, %p83
      %p85 = scmp.ne.s32.totalorder %s71, %s72
      %p86 = scmp.eq.s32.totalorder %s38, 2
      %p87 = por %p85, %p86
      %p89 = scmp.ne.s32.totalorder %s72, %s88
      %p90 = scmp.eq.s32.totalorder %s38, 0
      %p91 = por %p89, %p90
      %s93 = sadd.s32 %s92, 1
      %p96 = scmp.eq.s32.totalorder %s32, 2
      %p97 = scmp.ne.s32.totalorder %s92, %s94
      %p98 = scmp.eq.s32.totalorder %s32, 0
      %p99 = por %p97, %p98
      %p100 = scmp.ne.s32.totalorder %s92, %s94
      %p101 = scmp.eq.s32.totalorder %s37, 2
      %p102 = por %p100, %p101
      %p103 = scmp.ne.s32.totalorder %s94, %s95
      %p104 = scmp.eq.s32.totalorder %s37, 0
      %p105 = por %p103, %p104
      %p106 = scmp.ne.s32.totalorder %s94, %s95
      %p107 = scmp.eq.s32.totalorder %s38, 2
      %p108 = por %p106, %p107
      %p110 = scmp.ne.s32.totalorder %s95, %s109
      %p111 = scmp.eq.s32.totalorder %s38, 0
      %p112 = por %p110, %p111
      %s114 = sadd.s32 %s113, 1
      %p117 = scmp.eq.s32.totalorder %s32, 2
      %p118 = scmp.ne.s32.totalorder %s113, %s115
      %p119 = scmp.eq.s32.totalorder %s32, 0
      %p120 = por %p118, %p119
      %p121 = scmp.ne.s32.totalorder %s113, %s115
      %p122 = scmp.eq.s32.totalorder %s37, 2
      %p123 = por %p121, %p122
      %p124 = scmp.ne.s32.totalorder %s115, %s116
      %p125 = scmp.eq.s32.totalorder %s37, 0
      %p126 = por %p124, %p125
      %p127 = scmp.ne.s32.totalorder %s115, %s116
      %p128 = scmp.eq.s32.totalorder %s38, 2
      %p129 = por %p127, %p128
      %p131 = scmp.ne.s32.totalorder %s116, %s130
      %p132 = scmp.eq.s32.totalorder %s38, 0
      %p133 = por %p131, %p132
      %s135 = sadd.s32 %s134, 1
      %p138 = scmp.eq.s32.totalorder %s32, 2
      %p139 = scmp.ne.s32.totalorder %s134, %s136
      %p140 = scmp.eq.s32.totalorder %s32, 0
      %p141 = por %p139, %p140
      %p142 = scmp.ne.s32.totalorder %s134, %s136
      %p143 = scmp.eq.s32.totalorder %s37, 2
      %p144 = por %p142, %p143
      %p145 = scmp.ne.s32.totalorder %s136, %s137
      %p146 = scmp.eq.s32.totalorder %s37, 0
      %p147 = por %p145, %p146
      %p148 = scmp.ne.s32.totalorder %s136, %s137
      %p149 = scmp.eq.s32.totalorder %s38, 2
      %p150 = por %p148, %p149
      %p152 = scmp.ne.s32.totalorder %s137, %s151
      %p153 = scmp.eq.s32.totalorder %s38, 0
      %p154 = por %p152, %p153
      %s156 = sadd.s32 %s155, 1
      %p159 = scmp.eq.s32.totalorder %s32, 2
      %p160 = scmp.ne.s32.totalorder %s155, %s157
      %p161 = scmp.eq.s32.totalorder %s32, 0
      %p162 = por %p160, %p161
      %p163 = scmp.ne.s32.totalorder %s155, %s157
      %p164 = scmp.eq.s32.totalorder %s37, 2
      %p165 = por %p163, %p164
      %p166 = scmp.ne.s32.totalorder %s157, %s158
      %p167 = scmp.eq.s32.totalorder %s37, 0
      %p168 = por %p166, %p167
      %p169 = scmp.ne.s32.totalorder %s157, %s158
      %p170 = scmp.eq.s32.totalorder %s38, 2
      %p171 = por %p169, %p170
      %p173 = scmp.ne.s32.totalorder %s158, %s172
      %p174 = scmp.eq.s32.totalorder %s38, 0
      %p175 = por %p173, %p174
      %s176 = ssub.s32 %s32, %s39
      %p177 = scmp.eq.s32.totalorder %s176, 0
      %s179 = sadd.s32 %s178, 1
      %s180 = scalar_select %p177, %s178, %s179
      %p183 = pneg %p177
      %p184 = scmp.eq.s32.totalorder %s32, 2
      %p185 = por %p183, %p184
      %p186 = scmp.ne.s32.totalorder %s178, %s181
      %p187 = scmp.eq.s32.totalorder %s32, 0
      %p188 = por %p186, %p187
      %p189 = scmp.ne.s32.totalorder %s178, %s181
      %p190 = scmp.eq.s32.totalorder %s37, 2
      %p191 = por %p189, %p190
      %p192 = scmp.ne.s32.totalorder %s181, %s182
      %p193 = scmp.eq.s32.totalorder %s37, 0
      %p194 = por %p192, %p193
      %p195 = scmp.ne.s32.totalorder %s181, %s182
      %p196 = scmp.eq.s32.totalorder %s38, 2
      %p197 = por %p195, %p196
      %p199 = scmp.ne.s32.totalorder %s182, %s198
      %p200 = scmp.eq.s32.totalorder %s38, 0
      %p201 = por %p199, %p200
      %p202 = scmp.le.s32.totalorder 1, %s32
      %p203 = scmp.lt.s32.totalorder %s32, 4
      %p204 = pnand %p202, %p203
      %p205 = pneg %p204
      // Predicated region
      $region9: #{_fused_forward.1} parent=5 // pred_check
        _
      $region10: #{_fused_forward.1} parent=5 // pred_check_branch
        %207 = sbr.rel (%p204) target = $region12
      $region11: #{_fused_forward.1} parent=5 // pred_region
        %s208 = ssub.s32 %s32, 1
        // Predicated region
        $region13: #{_fused_forward.1} parent=11 // pred_check
          %p209 = pneg %p105
        $region14: #{_fused_forward.1} parent=11 // pred_check_branch
          %211 = sbr.rel (%p209) target = $region16
        $region15: #{_fused_forward.1} parent=11 // pred_region
          %213 = vsyncadd [#allocation8], 0
          %s214 = sshll.u32 %s3, 4
          %s215 = int_to_ptr.hbm [resolvable:$true] %s214
          %s216 = sshll.u32 [#allocation9], 4
          %s217 = int_to_ptr.vmem [resolvable:$true] %s216
          %222 = dma.hbm_to_vmem [thread:$0]  %s215, 2048, %s217, [#allocation8], 128, 128, 8
        $region16: #{_fused_forward.1} parent=11 // pred_fallthru
          _
        // Predicated region
        $region17: #{_fused_forward.1} parent=11 // pred_check
          %p223 = pneg %p126
        $region18: #{_fused_forward.1} parent=11 // pred_check_branch
          %225 = sbr.rel (%p223) target = $region20
        $region19: #{_fused_forward.1} parent=11 // pred_region
          %227 = vsyncadd [#allocation11], 0
          %s228 = sshll.u32 %s4, 4
          %s229 = int_to_ptr.hbm [resolvable:$true] %s228
          %s230 = sshll.u32 [#allocation10], 4
          %s231 = int_to_ptr.vmem [resolvable:$true] %s230
          %236 = dma.hbm_to_vmem [thread:$0]  %s229, 2048, %s231, [#allocation11], 128, 128, 8
        $region20: #{_fused_forward.1} parent=11 // pred_fallthru
          _
        // Predicated region
        $region21: #{_fused_forward.1} parent=11 // pred_check
          %p237 = pneg %p147
        $region22: #{_fused_forward.1} parent=11 // pred_check_branch
          %239 = sbr.rel (%p237) target = $region24
        $region23: #{_fused_forward.1} parent=11 // pred_region
          %241 = vsyncadd [#allocation11], 0
          %s242 = sshll.u32 %s5, 4
          %s243 = int_to_ptr.hbm [resolvable:$true] %s242
          %s244 = sshll.u32 [#allocation12], 4
          %s245 = int_to_ptr.vmem [resolvable:$true] %s244
          %250 = dma.hbm_to_vmem [thread:$0]  %s243, 2048, %s245, [#allocation11], 128, 128, 8
        $region24: #{_fused_forward.1} parent=11 // pred_fallthru
          _
        // Predicated region
        $region25: #{_fused_forward.1} parent=11 // pred_check
          %p251 = pneg %p168
        $region26: #{_fused_forward.1} parent=11 // pred_check_branch
          %253 = sbr.rel (%p251) target = $region28
        $region27: #{_fused_forward.1} parent=11 // pred_region
          %255 = vsyncadd [#allocation14], 0
          %s256 = sshll.u32 %s6, 4
          %s257 = int_to_ptr.hbm [resolvable:$true] %s256
          %s258 = sshll.u32 [#allocation13], 4
          %s259 = int_to_ptr.vmem [resolvable:$true] %s258
          %264 = dma.hbm_to_vmem [thread:$0]  %s257, 2048, %s259, [#allocation14], 128, 128, 8
        $region28: #{_fused_forward.1} parent=11 // pred_fallthru
          _
      $region12: #{_fused_forward.1} parent=5 // pred_fallthru
        _
      %p265 = scmp.lt.s32.totalorder %s32, 3
      // Predicated region
      $region29: #{_fused_forward.1} parent=5 // pred_check
        %p266 = pneg %p265
      $region30: #{_fused_forward.1} parent=5 // pred_check_branch
        %268 = sbr.rel (%p266) target = $region32
      $region31: #{_fused_forward.1} parent=5 // pred_region
        // Predicated region
        $region33: #{_fused_forward.1} parent=31 // pred_check
          %p269 = pneg %p52
        $region34: #{_fused_forward.1} parent=31 // pred_check_branch
          %271 = sbr.rel (%p269) target = $region36
        $region35: #{_fused_forward.1} parent=31 // pred_region
          %s272 = sand.u32 %s42, 1
          %s273 = scalar_lea.sflag [#allocation5], %s272
          %s274 = sand.u32 %s42, 1
          %s275 = smul.addr %s274, 24
          %s276 = scalar_lea.vmem [#allocation4], %s275
          %278 = vsyncadd %s273, 0
          %s279 = smul.addr %s32, 3
          %s280 = smul.addr %s279, 8
          %s281 = scalar_lea.hbm %s1, %s280
          %s282 = sshll.u32 %s281, 4
          %s283 = int_to_ptr.hbm [resolvable:$true] %s282
          %s284 = sshll.u32 %s276, 4
          %s285 = int_to_ptr.vmem [resolvable:$true] %s284
          %290 = dma.hbm_to_vmem [thread:$0]  %s283, 384, %s285, %s273, 128, 128, 8
        $region36: #{_fused_forward.1} parent=31 // pred_fallthru
          _
        // Predicated region
        $region37: #{_fused_forward.1} parent=31 // pred_check
          %p291 = pneg %p78
        $region38: #{_fused_forward.1} parent=31 // pred_check_branch
          %293 = sbr.rel (%p291) target = $region40
        $region39: #{_fused_forward.1} parent=31 // pred_region
          %s294 = sand.u32 %s32, 1
          %s295 = scalar_lea.sflag [#allocation8], %s294
          %s296 = sand.u32 %s68, 1
          %s297 = smul.addr %s296, 8
          %s298 = scalar_lea.vmem [#allocation7], %s297
          %300 = vsyncadd %s295, 0
          %s301 = smul.addr %s32, 8
          %s302 = scalar_lea.hbm %s2, %s301
          %s304 = sshll.u32 %s302, 4
          %s305 = int_to_ptr.hbm [resolvable:$true] %s304
          %s306 = sshll.u32 %s298, 4
          %s307 = int_to_ptr.vmem [resolvable:$true] %s306
          %309 = dma.hbm_to_vmem [thread:$0]  %s305, 128, %s307, %s295
        $region40: #{_fused_forward.1} parent=31 // pred_fallthru
          _
      $region32: #{_fused_forward.1} parent=5 // pred_fallthru
        _
      %p310 = scmp.le.s32.totalorder 1, %s32
      %p311 = scmp.lt.s32.totalorder %s32, 4
      %p312 = pnand %p310, %p311
      %p313 = pneg %p312
      // Predicated region
      $region41: #{_fused_forward.1} parent=5 // pred_check
        _
      $region42: #{_fused_forward.1} parent=5 // pred_check_branch
        %315 = sbr.rel (%p312) target = $region44
      $region43: #{_fused_forward.1} parent=5 // pred_region
        %s316 = ssub.s32 %s32, 1
        %s317 = sand.u32 %s45, 1
        %s318 = scalar_lea.sflag [#allocation5], %s317
        %s319 = sand.u32 %s45, 1
        %s320 = smul.addr %s319, 24
        %s321 = scalar_lea.vmem [#allocation4], %s320
        // Predicated region
        $region45: #{_fused_forward.1} parent=43 // pred_check
          %p322 = pneg %p58
        $region46: #{_fused_forward.1} parent=43 // pred_check_branch
          %324 = sbr.rel (%p322) target = $region48
        $region47: #{_fused_forward.1} parent=43 // pred_region
          %326 = dma.done %s318, 384
        $region48: #{_fused_forward.1} parent=43 // pred_fallthru
          _
        %s327 = sand.u32 %s37, 1
        %s328 = scalar_lea.sflag [#allocation8], %s327
        %s329 = sand.u32 %s71, 1
        %s330 = smul.addr %s329, 8
        %s331 = scalar_lea.vmem [#allocation7], %s330
        // Predicated region
        $region49: #{_fused_forward.1} parent=43 // pred_check
          %p332 = pneg %p84
        $region50: #{_fused_forward.1} parent=43 // pred_check_branch
          %334 = sbr.rel (%p332) target = $region52
        $region51: #{_fused_forward.1} parent=43 // pred_region
          %336 = dma.done %s328, 128
        $region52: #{_fused_forward.1} parent=43 // pred_fallthru
          _
        // Predicated region
        $region53: #{_fused_forward.1} parent=43 // pred_check
          %p337 = pneg %p105
        $region54: #{_fused_forward.1} parent=43 // pred_check_branch
          %339 = sbr.rel (%p337) target = $region56
        $region55: #{_fused_forward.1} parent=43 // pred_region
          %341 = dma.done [#allocation8], 2048
        $region56: #{_fused_forward.1} parent=43 // pred_fallthru
          _
        // Predicated region
        $region57: #{_fused_forward.1} parent=43 // pred_check
          %p342 = pneg %p126
        $region58: #{_fused_forward.1} parent=43 // pred_check_branch
          %344 = sbr.rel (%p342) target = $region60
        $region59: #{_fused_forward.1} parent=43 // pred_region
          %346 = dma.done [#allocation11], 2048
        $region60: #{_fused_forward.1} parent=43 // pred_fallthru
          _
        // Predicated region
        $region61: #{_fused_forward.1} parent=43 // pred_check
          %p347 = pneg %p147
        $region62: #{_fused_forward.1} parent=43 // pred_check_branch
          %349 = sbr.rel (%p347) target = $region64
        $region63: #{_fused_forward.1} parent=43 // pred_region
          %351 = dma.done [#allocation11], 2048
        $region64: #{_fused_forward.1} parent=43 // pred_fallthru
          _
        // Predicated region
        $region65: #{_fused_forward.1} parent=43 // pred_check
          %p352 = pneg %p168
        $region66: #{_fused_forward.1} parent=43 // pred_check_branch
          %354 = sbr.rel (%p352) target = $region68
        $region67: #{_fused_forward.1} parent=43 // pred_region
          %356 = dma.done [#allocation14], 2048
        $region68: #{_fused_forward.1} parent=43 // pred_fallthru
          _
        %s357 = sand.u32 %s45, 1
        %s358 = scalar_lea.sflag [#allocation5], %s357
        %s359 = sand.u32 %s45, 1
        %s360 = smul.addr %s359, 24
        %s361 = scalar_lea.vmem [#allocation4], %s360
        %p362 = pneg %p58
        %p363 = pneg %p55
        %s364 = sand.u32 %s37, 1
        %s365 = scalar_lea.sflag [#allocation8], %s364
        %s366 = sand.u32 %s71, 1
        %s367 = smul.addr %s366, 8
        %s368 = scalar_lea.vmem [#allocation7], %s367
        %p369 = pneg %p84
        %p370 = pneg %p81
        %p371 = pneg %p105
        %p372 = pneg %p102
        %p373 = pneg %p126
        %p374 = pneg %p123
        %p375 = pneg %p147
        %p376 = pneg %p144
        %p377 = pneg %p168
        %p378 = pneg %p165
        %p379 = pneg %p194
        %p380 = pneg %p191
        %s381 = sand.u32 %s181, 1
        %s382 = scalar_lea.sflag [#allocation6], %s381
        %s383 = sand.u32 %s181, 1
        %s384 = smul.addr %s383, 8
        %s385 = scalar_lea.vmem [#allocation15], %s384
        %v386 = vld [vmem:[%s321] sm:$0xff]
        %v387 = vld [vmem:[%s321 + $0x8] sm:$0xff]
        %v388 = vld [vmem:[%s321 + $0x10] sm:$0xff]
        %v389 = vld [vmem:[%s331] sm:$0xff]
        %v390 = vlaneseq
        %v391 = vshrl.u32 %v390, 7
        %v392 = vadd.s32 %v391, 8
        %v393 = vadd.s32 %v391, 16
        %v394 = vlaneseq
        %v395 = vand.u32 %v394, 127
        %s396 = smul.u32 %s37, 128
        %s397 = sld [smem:[#allocation3 + %s396]]
        %vm398 = vcmp.ge.s32.totalorder %v391, 0
        %vm399 = vcmp.ge.s32.totalorder %v392, 0
        %vm400 = vcmp.ge.s32.totalorder %v393, 0
        %vm401 = vcmp.lt.s32.totalorder %v391, 8
        %vm402 = vcmp.lt.s32.totalorder %v392, 8
        %vm403 = vcmp.lt.s32.totalorder %v393, 8
        %vm404 = vmand %vm398, %vm401
        %vm405 = vmand %vm399, %vm402
        %vm406 = vmand %vm400, %vm403
        %v407 = vstv %s397
        %vm408 = vcmp.lt.s32.totalorder %v391, %v407
        %vm409 = vcmp.lt.s32.totalorder %v392, %v407
        %vm410 = vcmp.lt.s32.totalorder %v393, %v407
        %vm411 = vmand %vm404, %vm408
        %vm412 = vmand %vm405, %vm409
        %vm413 = vmand %vm406, %vm410
        %vm414 = vcmp.ge.s32.totalorder %v395, 0
        %vm415 = vcmp.lt.s32.totalorder %v395, %v407
        %vm416 = vmand %vm414, %vm415
        %p417 = scmp.gt.s32.totalorder %s397, 1
        %s418 = scalar_select %p417, 1, 0
        %v419 = vstv %s418
        %vm420 = vcmp.eq.s32.totalorder %v419, 1
        %vm421 = vmand %vm404, %vm420
        %vm422 = vmand %vm405, %vm420
        %vm423 = vmand %vm406, %vm420
        %v424 = vsel %vm404, 1, 0
        %v425 = vsel %vm405, 1, 0
        %v426 = vsel %vm406, 1, 0
        %vm427 = vcmp.eq.s32.totalorder %v424, 1
        %vm428 = vcmp.eq.s32.totalorder %v425, 1
        %vm429 = vcmp.eq.s32.totalorder %v426, 1
        %v430 = vsel %vm416, 1, 0
        %vm431 = vcmp.eq.s32.totalorder %v430, 1
        %vm432 = vmand %vm427, %vm431
        %vm433 = vmand %vm428, %vm431
        %vm434 = vmand %vm429, %vm431
        %s435 = sadd.s32 %s396, 1
        %s436 = sld [smem:[#allocation3 + %s435]]
        %vm437 = vcmp.ge.s32.totalorder %v391, 8
        %vm438 = vcmp.ge.s32.totalorder %v392, 8
        %vm439 = vcmp.ge.s32.totalorder %v393, 8
        %vm440 = vcmp.lt.s32.totalorder %v391, 16
        %vm441 = vcmp.lt.s32.totalorder %v392, 16
        %vm442 = vcmp.lt.s32.totalorder %v393, 16
        %vm443 = vmand %vm437, %vm440
        %vm444 = vmand %vm438, %vm441
        %vm445 = vmand %vm439, %vm442
        %s446 = sadd.s32 %s436, 8
        %v447 = vstv %s446
        %vm448 = vcmp.lt.s32.totalorder %v391, %v447
        %vm449 = vcmp.lt.s32.totalorder %v392, %v447
        %vm450 = vcmp.lt.s32.totalorder %v393, %v447
        %vm451 = vmand %vm443, %vm448
        %vm452 = vmand %vm444, %vm449
        %vm453 = vmand %vm445, %vm450
        %vm454 = vcmp.ge.s32.totalorder %v395, 8
        %vm455 = vcmp.lt.s32.totalorder %v395, %v447
        %vm456 = vmand %vm454, %vm455
        %vm457 = vmor %vm411, %vm451
        %vm458 = vmor %vm412, %vm452
        %vm459 = vmor %vm413, %vm453
        %p460 = scmp.gt.s32.totalorder %s436, 1
        %s461 = scalar_select %p460, 1, 0
        %v462 = vstv %s461
        %vm463 = vcmp.eq.s32.totalorder %v462, 1
        %vm464 = vmand %vm443, %vm463
        %vm465 = vmand %vm444, %vm463
        %vm466 = vmand %vm445, %vm463
        %vm467 = vmor %vm421, %vm464
        %vm468 = vmor %vm422, %vm465
        %vm469 = vmor %vm423, %vm466
        %vm470 = vmor %vm416, %vm456
        %v471 = vsel %vm443, 1, 0
        %v472 = vsel %vm444, 1, 0
        %v473 = vsel %vm445, 1, 0
        %vm474 = vcmp.eq.s32.totalorder %v471, 1
        %vm475 = vcmp.eq.s32.totalorder %v472, 1
        %vm476 = vcmp.eq.s32.totalorder %v473, 1
        %v477 = vsel %vm456, 1, 0
        %vm478 = vcmp.eq.s32.totalorder %v477, 1
        %vm479 = vmand %vm474, %vm478
        %vm480 = vmand %vm475, %vm478
        %vm481 = vmand %vm476, %vm478
        %vm482 = vmor %vm432, %vm479
        %vm483 = vmor %vm433, %vm480
        %vm484 = vmor %vm434, %vm481
        %s485 = sadd.s32 %s396, 2
        %s486 = sld [smem:[#allocation3 + %s485]]
        %vm487 = vcmp.ge.s32.totalorder %v391, 16
        %vm488 = vcmp.ge.s32.totalorder %v392, 16
        %vm489 = vcmp.ge.s32.totalorder %v393, 16
        %vm490 = vcmp.lt.s32.totalorder %v391, 24
        %vm491 = vcmp.lt.s32.totalorder %v392, 24
        %vm492 = vcmp.lt.s32.totalorder %v393, 24
        %vm493 = vmand %vm487, %vm490
        %vm494 = vmand %vm488, %vm491
        %vm495 = vmand %vm489, %vm492
        %s496 = sadd.s32 %s486, 16
        %v497 = vstv %s496
        %vm498 = vcmp.lt.s32.totalorder %v391, %v497
        %vm499 = vcmp.lt.s32.totalorder %v392, %v497
        %vm500 = vcmp.lt.s32.totalorder %v393, %v497
        %vm501 = vmand %vm493, %vm498
        %vm502 = vmand %vm494, %vm499
        %vm503 = vmand %vm495, %vm500
        %vm504 = vcmp.ge.s32.totalorder %v395, 16
        %vm505 = vcmp.lt.s32.totalorder %v395, %v497
        %vm506 = vmand %vm504, %vm505
        %vm507 = vmor %vm457, %vm501
        %vm508 = vmor %vm458, %vm502
        %vm509 = vmor %vm459, %vm503
        %p510 = scmp.gt.s32.totalorder %s486, 1
        %s511 = scalar_select %p510, 1, 0
        %v512 = vstv %s511
        %vm513 = vcmp.eq.s32.totalorder %v512, 1
        %vm514 = vmand %vm493, %vm513
        %vm515 = vmand %vm494, %vm513
        %vm516 = vmand %vm495, %vm513
        %vm517 = vmor %vm467, %vm514
        %vm518 = vmor %vm468, %vm515
        %vm519 = vmor %vm469, %vm516
        %vm520 = vmor %vm470, %vm506
        %v521 = vsel %vm493, 1, 0
        %v522 = vsel %vm494, 1, 0
        %v523 = vsel %vm495, 1, 0
        %vm524 = vcmp.eq.s32.totalorder %v521, 1
        %vm525 = vcmp.eq.s32.totalorder %v522, 1
        %vm526 = vcmp.eq.s32.totalorder %v523, 1
        %v527 = vsel %vm506, 1, 0
        %vm528 = vcmp.eq.s32.totalorder %v527, 1
        %vm529 = vmand %vm524, %vm528
        %vm530 = vmand %vm525, %vm528
        %vm531 = vmand %vm526, %vm528
        %vm532 = vmor %vm482, %vm529
        %vm533 = vmor %vm483, %vm530
        %vm534 = vmor %vm484, %vm531
        %v535 = vld [vmem:[#allocation9] sm:$0xff]
        %v536 = vld [vmem:[#allocation9 + $0x8] sm:$0xff]
        %v537 = vld [vmem:[#allocation9 + $0x10] sm:$0xff]
        %v538 = vld [vmem:[#allocation9 + $0x18] sm:$0xff]
        %v539 = vld [vmem:[#allocation9 + $0x20] sm:$0xff]
        %v540 = vld [vmem:[#allocation9 + $0x28] sm:$0xff]
        %v541 = vld [vmem:[#allocation9 + $0x30] sm:$0xff]
        %v542 = vld [vmem:[#allocation9 + $0x38] sm:$0xff]
        %v543 = vld [vmem:[#allocation9 + $0x40] sm:$0xff]
        %v544 = vld [vmem:[#allocation9 + $0x48] sm:$0xff]
        %v545 = vld [vmem:[#allocation9 + $0x50] sm:$0xff]
        %v546 = vld [vmem:[#allocation9 + $0x58] sm:$0xff]
        %v547 = vld [vmem:[#allocation9 + $0x60] sm:$0xff]
        %v548 = vld [vmem:[#allocation9 + $0x68] sm:$0xff]
        %v549 = vld [vmem:[#allocation9 + $0x70] sm:$0xff]
        %v550 = vld [vmem:[#allocation9 + $0x78] sm:$0xff]
        %551 = vmatpush.xpose.msra.mxu0 %v550
        %552 = vmatpush.xpose.msra.mxu0 %v549
        %553 = vmatpush.xpose.msra.mxu0 %v548
        %554 = vmatpush.xpose.msra.mxu0 %v547
        %555 = vmatpush.xpose.msra.mxu0 %v546
        %556 = vmatpush.xpose.msra.mxu0 %v545
        %557 = vmatpush.xpose.msra.mxu0 %v544
        %558 = vmatpush.xpose.msra.mxu0 %v543
        %559 = vmatpush.xpose.msra.mxu0 %v542
        %560 = vmatpush.xpose.msra.mxu0 %v541
        %561 = vmatpush.xpose.msra.mxu0 %v540
        %562 = vmatpush.xpose.msra.mxu0 %v539
        %563 = vmatpush.xpose.msra.mxu0 %v538
        %564 = vmatpush.xpose.msra.mxu0 %v537
        %565 = vmatpush.xpose.msra.mxu0 %v536
        %566 = vmatpush.xpose.msra.mxu0 %v535
        %567 = vmatmul.f32.gmra.mxu0 %v386
        %v568 = vpop.f32.mrf.mxu0
        %v569 = vadd.f32 0.0, %v568
        %570 = vmatmul.f32.gmra.mxu0 %v387
        %v571 = vpop.f32.mrf.mxu0
        %v572 = vadd.f32 0.0, %v571
        %573 = vmatmul.f32.gmra.mxu0 %v388
        %v574 = vpop.f32.mrf.mxu0
        %v575 = vadd.f32 0.0, %v574
        %576 = vdwg.mxu0
        %577 = vmatpush.xpose.msra.mxu0 0.0
        %578 = vmatpush.xpose.msra.mxu0 0.0
        %579 = vmatpush.xpose.msra.mxu0 0.0
        %580 = vmatpush.xpose.msra.mxu0 0.0
        %581 = vmatpush.xpose.msra.mxu0 0.0
        %582 = vmatpush.xpose.msra.mxu0 0.0
        %583 = vmatpush.xpose.msra.mxu0 0.0
        %584 = vmatpush.xpose.msra.mxu0 0.0
        %585 = vmatpush.xpose.msra.mxu0 0.0
        %586 = vmatpush.xpose.msra.mxu0 0.0
        %587 = vmatpush.xpose.msra.mxu0 0.0
        %588 = vmatpush.xpose.msra.mxu0 0.0
        %589 = vmatpush.xpose.msra.mxu0 0.0
        %590 = vmatpush.xpose.msra.mxu0 %v575
        %591 = vmatpush.xpose.msra.mxu0 %v572
        %592 = vmatpush.xpose.msra.mxu0 %v569
        %593 = vmatmul.f32.gmra.mxu0 %v569
        %v594 = vpop.f32.mrf.mxu0
        %v595 = vadd.f32 0.0, %v594
        %596 = vmatmul.f32.gmra.mxu0 %v572
        %v597 = vpop.f32.mrf.mxu0
        %v598 = vadd.f32 0.0, %v597
        %599 = vmatmul.f32.gmra.mxu0 %v575
        %v600 = vpop.f32.mrf.mxu0
        %v601 = vadd.f32 0.0, %v600
        %602 = vdwg.mxu0
        %v603 = vmul.f32 %v595, 0.25
        %v604 = vmul.f32 %v598, 0.25
        %v605 = vmul.f32 %v601, 0.25
        %v606 = vsel %vm532, %v603, -1e+30
        %v607 = vsel %vm533, %v604, -1e+30
        %v608 = vsel %vm534, %v605, -1e+30
        %vm609 = vcmask 195584
        %v610 = vsel %vm609, %v606, -inf
        %611 = vmax.xlane.f32.xlu0 %v610
        %v612 = vpop.xlane.xlu0 %611
        %v613 = vsel %vm609, %v607, -inf
        %614 = vmax.xlane.f32.xlu0 %v613
        %v615 = vpop.xlane.xlu0 %614
        %v616 = vsel %vm609, %v608, -inf
        %617 = vmax.xlane.f32.xlu0 %v616
        %v618 = vpop.xlane.xlu0 %617
        %v619 = vsub.f32 %v606, %v612
        %v620 = vsub.f32 %v607, %v615
        %v621 = vsub.f32 %v608, %v618
        %v622 = vmul.f32 %v619, 1.442695
        %v623 = vpow.pop %v622
        %v624 = vmul.f32 %v620, 1.442695
        %v625 = vpow.pop %v624
        %v626 = vmul.f32 %v621, 1.442695
        %v627 = vpow.pop %v626
        %v628 = vsel %vm609, %v623, 0.0
        %629 = vadd.xlane.f32.xlu0 %v628
        %v630 = vpop.xlane.xlu0 %629
        %v631 = vsel %vm609, %v625, 0.0
        %632 = vadd.xlane.f32.xlu0 %v631
        %v633 = vpop.xlane.xlu0 %632
        %v634 = vsel %vm609, %v627, 0.0
        %635 = vadd.xlane.f32.xlu0 %v634
        %v636 = vpop.xlane.xlu0 %635
        %v637 = vrcp.pop %v630
        %v638 = vmul.f32 %v630, %v637
        %v639 = vsub.f32 1.0, %v638
        %v640 = vmul.f32 %v637, %v639
        %v641 = vadd.f32 %v637, %v640
        %vm642 = vweird.f32 %v630
        %vm643 = vweird.f32 %v637
        %vm644 = vmor %vm642, %vm643
        %v645 = vsel %vm644, %v637, %v641
        %v646 = vand.u32 2147483647, %v630
        %vm647 = vcmp.eq.f32.partialorder %v646, 8.507059e+37
        %v648 = vand.u32 %v630, 2147483648
        %v649 = vor.u32 1.1754944e-38, %v648
        %v650 = vsel %vm647, %v649, %v645
        %v651 = vmul.f32 %v623, %v650
        %v652 = vrcp.pop %v633
        %v653 = vmul.f32 %v633, %v652
        %v654 = vsub.f32 1.0, %v653
        %v655 = vmul.f32 %v652, %v654
        %v656 = vadd.f32 %v652, %v655
        %vm657 = vweird.f32 %v633
        %vm658 = vweird.f32 %v652
        %vm659 = vmor %vm657, %vm658
        %v660 = vsel %vm659, %v652, %v656
        %v661 = vand.u32 2147483647, %v633
        %vm662 = vcmp.eq.f32.partialorder %v661, 8.507059e+37
        %v663 = vand.u32 %v633, 2147483648
        %v664 = vor.u32 1.1754944e-38, %v663
        %v665 = vsel %vm662, %v664, %v660
        %v666 = vmul.f32 %v625, %v665
        %v667 = vrcp.pop %v636
        %v668 = vmul.f32 %v636, %v667
        %v669 = vsub.f32 1.0, %v668
        %v670 = vmul.f32 %v667, %v669
        %v671 = vadd.f32 %v667, %v670
        %vm672 = vweird.f32 %v636
        %vm673 = vweird.f32 %v667
        %vm674 = vmor %vm672, %vm673
        %v675 = vsel %vm674, %v667, %v671
        %v676 = vand.u32 2147483647, %v636
        %vm677 = vcmp.eq.f32.partialorder %v676, 8.507059e+37
        %v678 = vand.u32 %v636, 2147483648
        %v679 = vor.u32 1.1754944e-38, %v678
        %v680 = vsel %vm677, %v679, %v675
        %v681 = vmul.f32 %v627, %v680
        %v683 = vsel %vm609, %v651, 0
        %v686 = vsel %vm609, %v666, 0
        %v689 = vsel %vm609, %v681, 0
        %691 = vmatpush.msra.mxu0 0.0
        %692 = vmatpush.msra.mxu0 0.0
        %693 = vmatpush.msra.mxu0 0.0
        %694 = vmatpush.msra.mxu0 0.0
        %695 = vmatpush.msra.mxu0 0.0
        %696 = vmatpush.msra.mxu0 0.0
        %697 = vmatpush.msra.mxu0 0.0
        %698 = vmatpush.msra.mxu0 0.0
        %699 = vmatpush.msra.mxu0 0.0
        %700 = vmatpush.msra.mxu0 0.0
        %701 = vmatpush.msra.mxu0 0.0
        %702 = vmatpush.msra.mxu0 0.0
        %703 = vmatpush.msra.mxu0 0.0
        %704 = vmatpush.msra.mxu0 %v388
        %705 = vmatpush.msra.mxu0 %v387
        %706 = vmatpush.msra.mxu0 %v386
        %707 = vmatmul.f32.gmra.mxu0 %v683
        %v708 = vpop.f32.mrf.mxu0
        %v709 = vadd.f32 0.0, %v708
        %710 = vmatmul.f32.gmra.mxu0 %v686
        %v711 = vpop.f32.mrf.mxu0
        %v712 = vadd.f32 0.0, %v711
        %713 = vmatmul.f32.gmra.mxu0 %v689
        %v714 = vpop.f32.mrf.mxu0
        %v715 = vadd.f32 0.0, %v714
        %716 = vdwg.mxu0
        %v717 = vld [vmem:[#allocation10] sm:$0xff]
        %v718 = vld [vmem:[#allocation10 + $0x8] sm:$0xff]
        %v719 = vld [vmem:[#allocation10 + $0x10] sm:$0xff]
        %v720 = vld [vmem:[#allocation10 + $0x18] sm:$0xff]
        %v721 = vld [vmem:[#allocation10 + $0x20] sm:$0xff]
        %v722 = vld [vmem:[#allocation10 + $0x28] sm:$0xff]
        %v723 = vld [vmem:[#allocation10 + $0x30] sm:$0xff]
        %v724 = vld [vmem:[#allocation10 + $0x38] sm:$0xff]
        %v725 = vld [vmem:[#allocation10 + $0x40] sm:$0xff]
        %v726 = vld [vmem:[#allocation10 + $0x48] sm:$0xff]
        %v727 = vld [vmem:[#allocation10 + $0x50] sm:$0xff]
        %v728 = vld [vmem:[#allocation10 + $0x58] sm:$0xff]
        %v729 = vld [vmem:[#allocation10 + $0x60] sm:$0xff]
        %v730 = vld [vmem:[#allocation10 + $0x68] sm:$0xff]
        %v731 = vld [vmem:[#allocation10 + $0x70] sm:$0xff]
        %v732 = vld [vmem:[#allocation10 + $0x78] sm:$0xff]
        %733 = vmatpush.xpose.msra.mxu0 %v732
        %734 = vmatpush.xpose.msra.mxu0 %v731
        %735 = vmatpush.xpose.msra.mxu0 %v730
        %736 = vmatpush.xpose.msra.mxu0 %v729
        %737 = vmatpush.xpose.msra.mxu0 %v728
        %738 = vmatpush.xpose.msra.mxu0 %v727
        %739 = vmatpush.xpose.msra.mxu0 %v726
        %740 = vmatpush.xpose.msra.mxu0 %v725
        %741 = vmatpush.xpose.msra.mxu0 %v724
        %742 = vmatpush.xpose.msra.mxu0 %v723
        %743 = vmatpush.xpose.msra.mxu0 %v722
        %744 = vmatpush.xpose.msra.mxu0 %v721
        %745 = vmatpush.xpose.msra.mxu0 %v720
        %746 = vmatpush.xpose.msra.mxu0 %v719
        %747 = vmatpush.xpose.msra.mxu0 %v718
        %748 = vmatpush.xpose.msra.mxu0 %v717
        %749 = vmatmul.f32.gmra.mxu0 %v709
        %v750 = vpop.f32.mrf.mxu0
        %v751 = vadd.f32 0.0, %v750
        %752 = vmatmul.f32.gmra.mxu0 %v712
        %v753 = vpop.f32.mrf.mxu0
        %v754 = vadd.f32 0.0, %v753
        %755 = vmatmul.f32.gmra.mxu0 %v715
        %v756 = vpop.f32.mrf.mxu0
        %v757 = vadd.f32 0.0, %v756
        %758 = vdwg.mxu0
        %v759 = vmax.f32 %v751, 0.0
        %v760 = vmax.f32 %v754, 0.0
        %v761 = vmax.f32 %v757, 0.0
        %v762 = vadd.f32 %v386, %v759
        %v763 = vadd.f32 %v387, %v760
        %v764 = vadd.f32 %v388, %v761
        %v765 = vsel %vm517, 1, 0
        %v766 = vsel %vm518, 1, 0
        %v767 = vsel %vm519, 1, 0
        %vm768 = vcmp.eq.s32.totalorder %v765, 1
        %vm769 = vcmp.eq.s32.totalorder %v766, 1
        %vm770 = vcmp.eq.s32.totalorder %v767, 1
        %v771 = vsel %vm768, %v762, %v386
        %v772 = vsel %vm769, %v763, %v387
        %v773 = vsel %vm770, %v764, %v388
        %v774 = vsel %vm507, 1, 0
        %v775 = vsel %vm508, 1, 0
        %v776 = vsel %vm509, 1, 0
        %vm777 = vcmp.eq.s32.totalorder %v774, 1
        %vm778 = vcmp.eq.s32.totalorder %v775, 1
        %vm779 = vcmp.eq.s32.totalorder %v776, 1
        %v780 = vsel %vm777, %v771, 0.0
        %v781 = vsel %vm778, %v772, 0.0
        %v782 = vsel %vm779, %v773, 0.0
        %v783 = vld [vmem:[#allocation12] sm:$0xff]
        %v784 = vld [vmem:[#allocation12 + $0x8] sm:$0xff]
        %v785 = vld [vmem:[#allocation12 + $0x10] sm:$0xff]
        %v786 = vld [vmem:[#allocation12 + $0x18] sm:$0xff]
        %v787 = vld [vmem:[#allocation12 + $0x20] sm:$0xff]
        %v788 = vld [vmem:[#allocation12 + $0x28] sm:$0xff]
        %v789 = vld [vmem:[#allocation12 + $0x30] sm:$0xff]
        %v790 = vld [vmem:[#allocation12 + $0x38] sm:$0xff]
        %v791 = vld [vmem:[#allocation12 + $0x40] sm:$0xff]
        %v792 = vld [vmem:[#allocation12 + $0x48] sm:$0xff]
        %v793 = vld [vmem:[#allocation12 + $0x50] sm:$0xff]
        %v794 = vld [vmem:[#allocation12 + $0x58] sm:$0xff]
        %v795 = vld [vmem:[#allocation12 + $0x60] sm:$0xff]
        %v796 = vld [vmem:[#allocation12 + $0x68] sm:$0xff]
        %v797 = vld [vmem:[#allocation12 + $0x70] sm:$0xff]
        %v798 = vld [vmem:[#allocation12 + $0x78] sm:$0xff]
        %799 = vmatpush.xpose.msra.mxu0 %v798
        %800 = vmatpush.xpose.msra.mxu0 %v797
        %801 = vmatpush.xpose.msra.mxu0 %v796
        %802 = vmatpush.xpose.msra.mxu0 %v795
        %803 = vmatpush.xpose.msra.mxu0 %v794
        %804 = vmatpush.xpose.msra.mxu0 %v793
        %805 = vmatpush.xpose.msra.mxu0 %v792
        %806 = vmatpush.xpose.msra.mxu0 %v791
        %807 = vmatpush.xpose.msra.mxu0 %v790
        %808 = vmatpush.xpose.msra.mxu0 %v789
        %809 = vmatpush.xpose.msra.mxu0 %v788
        %810 = vmatpush.xpose.msra.mxu0 %v787
        %811 = vmatpush.xpose.msra.mxu0 %v786
        %812 = vmatpush.xpose.msra.mxu0 %v785
        %813 = vmatpush.xpose.msra.mxu0 %v784
        %814 = vmatpush.xpose.msra.mxu0 %v783
        %815 = vmatmul.f32.gmra.mxu0 %v780
        %v816 = vpop.f32.mrf.mxu0
        %v817 = vadd.f32 0.0, %v816
        %818 = vmatmul.f32.gmra.mxu0 %v781
        %v819 = vpop.f32.mrf.mxu0
        %v820 = vadd.f32 0.0, %v819
        %821 = vmatmul.f32.gmra.mxu0 %v782
        %v822 = vpop.f32.mrf.mxu0
        %v823 = vadd.f32 0.0, %v822
        %824 = vdwg.mxu0
        %v825 = vld [vmem:[#allocation13] sm:$0xff]
        %v826 = vld [vmem:[#allocation13 + $0x8] sm:$0xff]
        %v827 = vld [vmem:[#allocation13 + $0x10] sm:$0xff]
        %v828 = vld [vmem:[#allocation13 + $0x18] sm:$0xff]
        %v829 = vld [vmem:[#allocation13 + $0x20] sm:$0xff]
        %v830 = vld [vmem:[#allocation13 + $0x28] sm:$0xff]
        %v831 = vld [vmem:[#allocation13 + $0x30] sm:$0xff]
        %v832 = vld [vmem:[#allocation13 + $0x38] sm:$0xff]
        %v833 = vld [vmem:[#allocation13 + $0x40] sm:$0xff]
        %v834 = vld [vmem:[#allocation13 + $0x48] sm:$0xff]
        %v835 = vld [vmem:[#allocation13 + $0x50] sm:$0xff]
        %v836 = vld [vmem:[#allocation13 + $0x58] sm:$0xff]
        %v837 = vld [vmem:[#allocation13 + $0x60] sm:$0xff]
        %v838 = vld [vmem:[#allocation13 + $0x68] sm:$0xff]
        %v839 = vld [vmem:[#allocation13 + $0x70] sm:$0xff]
        %v840 = vld [vmem:[#allocation13 + $0x78] sm:$0xff]
        %841 = vmatpush.xpose.msra.mxu0 %v840
        %842 = vmatpush.xpose.msra.mxu0 %v839
        %843 = vmatpush.xpose.msra.mxu0 %v838
        %844 = vmatpush.xpose.msra.mxu0 %v837
        %845 = vmatpush.xpose.msra.mxu0 %v836
        %846 = vmatpush.xpose.msra.mxu0 %v835
        %847 = vmatpush.xpose.msra.mxu0 %v834
        %848 = vmatpush.xpose.msra.mxu0 %v833
        %849 = vmatpush.xpose.msra.mxu0 %v832
        %850 = vmatpush.xpose.msra.mxu0 %v831
        %851 = vmatpush.xpose.msra.mxu0 %v830
        %852 = vmatpush.xpose.msra.mxu0 %v829
        %853 = vmatpush.xpose.msra.mxu0 %v828
        %854 = vmatpush.xpose.msra.mxu0 %v827
        %855 = vmatpush.xpose.msra.mxu0 %v826
        %856 = vmatpush.xpose.msra.mxu0 %v825
        %857 = vmatmul.f32.gmra.mxu0 %v389
        %v858 = vpop.f32.mrf.mxu0
        %v859 = vadd.f32 0.0, %v858
        %860 = vdwg.mxu0
        %861 = vmatpush.xpose.msra.mxu0 0.0
        %862 = vmatpush.xpose.msra.mxu0 0.0
        %863 = vmatpush.xpose.msra.mxu0 0.0
        %864 = vmatpush.xpose.msra.mxu0 0.0
        %865 = vmatpush.xpose.msra.mxu0 0.0
        %866 = vmatpush.xpose.msra.mxu0 0.0
        %867 = vmatpush.xpose.msra.mxu0 0.0
        %868 = vmatpush.xpose.msra.mxu0 0.0
        %869 = vmatpush.xpose.msra.mxu0 0.0
        %870 = vmatpush.xpose.msra.mxu0 0.0
        %871 = vmatpush.xpose.msra.mxu0 0.0
        %872 = vmatpush.xpose.msra.mxu0 0.0
        %873 = vmatpush.xpose.msra.mxu0 0.0
        %874 = vmatpush.xpose.msra.mxu0 %v823
        %875 = vmatpush.xpose.msra.mxu0 %v820
        %876 = vmatpush.xpose.msra.mxu0 %v817
        %877 = vmatmul.f32.gmra.mxu0 %v859
        %v878 = vpop.f32.mrf.mxu0
        %v879 = vadd.f32 0.0, %v878
        %880 = vdwg.mxu0
        %v881 = vmul.f32 %v879, 0.25
        %v882 = vsel %vm520, 0.0, -1e+30
        %v883 = vadd.f32 %v881, %v882
        %v884 = vsel %vm609, %v883, -inf
        %885 = vmax.xlane.f32.xlu0 %v884
        %v886 = vpop.xlane.xlu0 %885
        %v887 = vsub.f32 %v883, %v886
        %v888 = vmul.f32 %v887, 1.442695
        %v889 = vpow.pop %v888
        %v890 = vsel %vm609, %v889, 0.0
        %891 = vadd.xlane.f32.xlu0 %v890
        %v892 = vpop.xlane.xlu0 %891
        %v893 = vrcp.pop %v892
        %v894 = vmul.f32 %v892, %v893
        %v895 = vsub.f32 1.0, %v894
        %v896 = vmul.f32 %v893, %v895
        %v897 = vadd.f32 %v893, %v896
        %vm898 = vweird.f32 %v892
        %vm899 = vweird.f32 %v893
        %vm900 = vmor %vm898, %vm899
        %v901 = vsel %vm900, %v893, %v897
        %v902 = vand.u32 2147483647, %v892
        %vm903 = vcmp.eq.f32.partialorder %v902, 8.507059e+37
        %v904 = vand.u32 %v892, 2147483648
        %v905 = vor.u32 1.1754944e-38, %v904
        %v906 = vsel %vm903, %v905, %v901
        %v907 = vmul.f32 %v889, %v906
        %v909 = vsel %vm609, %v907, 0
        %911 = vmatpush.msra.mxu0 0.0
        %912 = vmatpush.msra.mxu0 0.0
        %913 = vmatpush.msra.mxu0 0.0
        %914 = vmatpush.msra.mxu0 0.0
        %915 = vmatpush.msra.mxu0 0.0
        %916 = vmatpush.msra.mxu0 0.0
        %917 = vmatpush.msra.mxu0 0.0
        %918 = vmatpush.msra.mxu0 0.0
        %919 = vmatpush.msra.mxu0 0.0
        %920 = vmatpush.msra.mxu0 0.0
        %921 = vmatpush.msra.mxu0 0.0
        %922 = vmatpush.msra.mxu0 0.0
        %923 = vmatpush.msra.mxu0 0.0
        %924 = vmatpush.msra.mxu0 %v782
        %925 = vmatpush.msra.mxu0 %v781
        %926 = vmatpush.msra.mxu0 %v780
        %927 = vmatmul.f32.gmra.mxu0 %v909
        %v928 = vpop.f32.mrf.mxu0
        %v929 = vadd.f32 0.0, %v928
        %930 = vdwg.mxu0
        %931 = vst [vmem:[%s385] sm:$0xff] %v929
        %s932 = sand.u32 %s181, 1
        %s933 = scalar_lea.sflag [#allocation6], %s932
        %s934 = sand.u32 %s181, 1
        %s935 = smul.addr %s934, 8
        %s936 = scalar_lea.vmem [#allocation15], %s935
        // Predicated region
        $region69: #{_fused_forward.1} parent=43 // pred_check
          %p937 = pneg %p191
        $region70: #{_fused_forward.1} parent=43 // pred_check_branch
          %939 = sbr.rel (%p937) target = $region72
        $region71: #{_fused_forward.1} parent=43 // pred_region
          %941 = vsyncadd %s933, 0
          %s942 = smul.addr %s37, 8
          %s943 = scalar_lea.hbm %s7, %s942
          %s945 = sshll.u32 %s936, 4
          %s946 = int_to_ptr.vmem [resolvable:$true] %s945
          %s947 = sshll.u32 %s943, 4
          %s948 = int_to_ptr.hbm [resolvable:$true] %s947
          %950 = dma.vmem_to_hbm [thread:$0]  %s946, 128, %s948, %s933
        $region72: #{_fused_forward.1} parent=43 // pred_fallthru
          _
      $region44: #{_fused_forward.1} parent=5 // pred_fallthru
        _
      %p951 = scmp.le.s32.totalorder 2, %s32
      // Predicated region
      $region73: #{_fused_forward.1} parent=5 // pred_check
        %p952 = pneg %p951
      $region74: #{_fused_forward.1} parent=5 // pred_check_branch
        %954 = sbr.rel (%p952) target = $region76
      $region75: #{_fused_forward.1} parent=5 // pred_region
        %s955 = ssub.s32 %s32, 2
        // Predicated region
        $region77: #{_fused_forward.1} parent=75 // pred_check
          %p956 = pneg %p197
        $region78: #{_fused_forward.1} parent=75 // pred_check_branch
          %958 = sbr.rel (%p956) target = $region80
        $region79: #{_fused_forward.1} parent=75 // pred_region
          %s959 = sand.u32 %s182, 1
          %s960 = scalar_lea.sflag [#allocation6], %s959
          %s961 = sand.u32 %s182, 1
          %s962 = smul.addr %s961, 8
          %s963 = scalar_lea.vmem [#allocation15], %s962
          %965 = dma.done %s960, 128
        $region80: #{_fused_forward.1} parent=75 // pred_fallthru
          _
      $region76: #{_fused_forward.1} parent=5 // pred_fallthru
        _
    $region6: #{_fused_forward.1} parent=1 // loop_footer
      %s36 = sadd.s32 1, %s32
    $region7: #{_fused_forward.1} parent=1 // loop_footer_branch
      %31 = sbr.rel target = $region3
    $region8: #{_fused_forward.1} parent=1 // loop_exit
      _
    %966 = vsyncpa [#allocation5], 1
    %s967 = scalar_lea.sflag [#allocation5], 1
    %968 = vsyncpa %s967, 1
    %969 = vsyncpa [#allocation8], 1
    %s970 = scalar_lea.sflag [#allocation8], 1
    %971 = vsyncpa %s970, 1
    %972 = vsyncpa [#allocation11], 1
    %973 = vsyncpa [#allocation14], 1
    %974 = vsyncpa [#allocation6], 1
    %s975 = scalar_lea.sflag [#allocation6], 1
    %976 = vsyncpa %s975, 1

</llo_original>
